<compile_context>
chip_gen: v5e
topology: v5e:2x2
jax: 0.10.0
libtpu: 0.0.40
codegen_flags: <defaults>
</compile_context>

<pallas_src>
import functools

import jax
import jax.numpy as jnp
from jax import lax
from jax.experimental import pallas as pl
from jax.experimental.pallas import tpu as pltpu

_LANES = 128
_MAX_TILE_ROWS = 8192          # 4 MiB per f32 input block
_MAX_CHUNK_ROWS = 512          # in-kernel accumulation chunk (~256 KiB temps)
_VMEM_LIMIT_BYTES = 48 * 1024 * 1024   # <= v7x 64 MiB physical; >> v5e 16 MiB default


def _cdiv(a: int, b: int) -> int:
    return -(-a // b)


def _round_up(x: int, m: int) -> int:
    return ((x + m - 1) // m) * m


def _sublane(dtype) -> int:
    # Minimum second-to-last tile dim by packing: f32 -> 8, bf16 -> 16, int8 -> 32.
    itemsize = jnp.dtype(dtype).itemsize
    return 8 * max(1, 4 // itemsize)


def _make_mse_kernel(rows: int, tile_rows: int, chunk_rows: int,
                     blocks_per_split: int):
    """Per-split partial-sum kernel; bakes all geometry in as constants."""
    num_chunks = tile_rows // chunk_rows

    def kernel(x_ref, t_ref, part_ref):
        s = pl.program_id(0)        # split ("parallel" -> one per TC on v7x)
        i = pl.program_id(1)        # block within split ("arbitrary")

        @pl.when(i == 0)
        def _():
            part_ref[...] = jnp.zeros_like(part_ref)

        # True (unclamped) first row of this block. The index_map clamps the
        # DMA to stay in bounds; masking against `rows` with the unclamped
        # offset zeroes both the garbage rows of a partial last block and the
        # duplicated block a split may see when total_blocks % num_splits != 0.
        block_row0 = (s * blocks_per_split + i) * tile_rows

        def chunk_body(c, acc):
            r0 = pl.multiple_of(c * chunk_rows, chunk_rows)
            xd = x_ref[pl.ds(r0, chunk_rows), :].astype(jnp.float32)
            td = t_ref[pl.ds(r0, chunk_rows), :].astype(jnp.float32)
            d = xd - td
            sq = d * d
            row_ids = (block_row0 + r0 +
                       lax.broadcasted_iota(jnp.int32, (chunk_rows, _LANES), 0))
            sq = jnp.where(row_ids < rows, sq, 0.0)   # where, not *, so NaN pad is safe
            # Sublane-grouped partial reduce (strided VPU adds); running state
            # stays one (8,128) f32 vreg instead of a full-tile temporary.
            return acc + sq.reshape(chunk_rows // 8, 8, _LANES).sum(axis=0)

        acc = lax.fori_loop(0, num_chunks, chunk_body,
                            jnp.zeros((8, _LANES), jnp.float32), unroll=True)
        part_ref[...] += acc

    return kernel


@functools.partial(jax.jit, static_argnames=("tile_rows_max", "num_splits"))
def content_loss_forward(x, target, *, tile_rows_max: int = _MAX_TILE_ROWS,
                         num_splits: int = 2):
    """Returns (input_unchanged, mse_loss_scalar) matching ContentLoss.forward."""
    assert x.shape == target.shape, "input/target shape mismatch"
    total = x.size
    if total == 0:
        return x, jnp.float32(0.0)

    x_flat = x.reshape(-1)
    t_flat = target.reshape(-1)

    rows = total // _LANES
    rem = total - rows * _LANES
    sub = _sublane(x.dtype)

    # Tiny inputs: not worth a kernel launch; plain JAX.
    if rows < sub:
        d = x_flat.astype(jnp.float32) - t_flat.astype(jnp.float32)
        return x, jnp.sum(d * d) * jnp.float32(1.0 / total)

    tail_sum = jnp.float32(0.0)
    if rem:
        # TODO(synk): the ragged-tail path slices the bulk (one extra copy);
        # a 1-D lane-masked layout would remove it, but conv feature maps are
        # virtually always 128-divisible so the common path stays copy-free.
        xt = x_flat[rows * _LANES:].astype(jnp.float32)
        tt = t_flat[rows * _LANES:].astype(jnp.float32)
        dtl = xt - tt
        tail_sum = jnp.sum(dtl * dtl)
        x_main = x_flat[: rows * _LANES]
        t_main = t_flat[: rows * _LANES]
    else:
        x_main = x_flat
        t_main = t_flat

    x2 = x_main.reshape(rows, _LANES)
    t2 = t_main.reshape(rows, _LANES)

    # ---- tile geometry: rebalance so the last block is nearly full ---------
    blocks_at_max = _cdiv(rows, tile_rows_max)
    balanced = _cdiv(rows, blocks_at_max)
    if balanced >= _MAX_CHUNK_ROWS:
        chunk_rows = _MAX_CHUNK_ROWS
    else:
        chunk_rows = _round_up(balanced, sub)
    tile_rows = _round_up(balanced, chunk_rows)
    total_blocks = _cdiv(rows, tile_rows)
    n_splits = min(num_splits, total_blocks)
    blocks_per_split = _cdiv(total_blocks, n_splits)
    last_block = total_blocks - 1

    def in_index_map(s, i):
        # Clamp so the DMA never targets an out-of-range block; contributions
        # of any duplicated block are zeroed in-kernel via the row mask.
        return (jnp.minimum(s * blocks_per_split + i, last_block), 0)

    itemsize = jnp.dtype(x.dtype).itemsize
    cost = pl.CostEstimate(
        flops=3 * rows * _LANES,
        transcendentals=0,
        bytes_accessed=2 * rows * _LANES * itemsize + n_splits * 8 * _LANES * 4,
    )

    partials = pl.pallas_call(
        _make_mse_kernel(rows, tile_rows, chunk_rows, blocks_per_split),
        out_shape=jax.ShapeDtypeStruct((n_splits * 8, _LANES), jnp.float32),
        grid_spec=pltpu.PrefetchScalarGridSpec(
            num_scalar_prefetch=0,
            grid=(n_splits, blocks_per_split),
            in_specs=[
                pl.BlockSpec((tile_rows, _LANES), in_index_map),
                pl.BlockSpec((tile_rows, _LANES), in_index_map),
            ],
            # Lane-dense per-split partials; final 2048-elem reduce is in JAX.
            out_specs=pl.BlockSpec((8, _LANES), lambda s, i: (s, 0)),
        ),
        compiler_params=pltpu.CompilerParams(
            dimension_semantics=("parallel", "arbitrary"),
            vmem_limit_bytes=_VMEM_LIMIT_BYTES,
        ),
        cost_estimate=cost,
    )(x2, t2)

    loss = (jnp.sum(partials) + tail_sum) * jnp.float32(1.0 / total)
    # forward() returns the input unchanged; the loss is a side value.
    return x, loss


if __name__ == "__main__":
    key = jax.random.PRNGKey(0)
    k1, k2, k3, k4, k5, k6 = jax.random.split(key, 6)

    # Conv-feature-map-like shape (N=2, C=4, H=16, W=16): 128-divisible,
    # zero-copy wrapper path, single block.
    x = jax.random.normal(k1, (2, 4, 16, 16), dtype=jnp.float32)
    t = jax.random.normal(k2, (2, 4, 16, 16), dtype=jnp.float32)
    out, loss = content_loss_forward(x, t)
    out = jax.block_until_ready(out)
    loss = jax.block_until_ready(loss)
    ref = jnp.mean((x - t) ** 2)
    assert jnp.allclose(loss, ref, rtol=1e-5, atol=1e-6), (loss, ref)
    assert jnp.array_equal(out, x)

    # Multi-block + 2-split path with a partial last block and a duplicated
    # (fully masked) block on split 1 (rows=328, tile=72 -> 5 blocks over 2 splits).
    x2 = jax.random.normal(k3, (2, 41, 4, 128), dtype=jnp.float32)
    t2 = jax.random.normal(k4, (2, 41, 4, 128), dtype=jnp.float32)
    _, loss2 = content_loss_forward(x2, t2, tile_rows_max=72)
    loss2 = jax.block_until_ready(loss2)
    ref2 = jnp.mean((x2 - t2) ** 2)
    assert jnp.allclose(loss2, ref2, rtol=1e-5, atol=1e-6), (loss2, ref2)

    # Ragged (non-128-divisible) shape: kernel streams the lane-aligned bulk
    # (10 rows, masked up to a 16-row block), 85-element tail handled in JAX.
    x3 = jax.random.normal(k5, (3, 5, 7, 13), dtype=jnp.float32)
    t3 = jax.random.normal(k6, (3, 5, 7, 13), dtype=jnp.float32)
    _, loss3 = content_loss_forward(x3, t3)
    loss3 = jax.block_until_ready(loss3)
    ref3 = jnp.mean((x3 - t3) ** 2)
    assert jnp.allclose(loss3, ref3, rtol=1e-5, atol=1e-6), (loss3, ref3)

    # Tiny-input fallback (pure JAX path, no kernel).
    x4 = jax.random.normal(k1, (2, 3, 5, 7), dtype=jnp.float32)
    t4 = jax.random.normal(k2, (2, 3, 5, 7), dtype=jnp.float32)
    _, loss4 = content_loss_forward(x4, t4)
    loss4 = jax.block_until_ready(loss4)
    ref4 = jnp.mean((x4 - t4) ** 2)
    assert jnp.allclose(loss4, ref4, rtol=1e-5, atol=1e-6), (loss4, ref4)

    print("KERNEL_OK")
</pallas_src>

<mosaic_0001>
module attributes {stable_mosaic.version = 11 : i64} {
  func.func @kernel(%arg0: i32, %arg1: i32, %arg2: memref<16x128xf32, #tpu.memory_space<vmem>>, %arg3: memref<16x128xf32, #tpu.memory_space<vmem>>, %arg4: memref<8x128xf32, #tpu.memory_space<vmem>>) attributes {dimension_semantics = [#tpu.dimension_semantics<parallel>, #tpu.dimension_semantics<arbitrary>], iteration_bounds = array<i64: 1, 1>, scalar_prefetch = 0 : i64, scratch_operands = 0 : i64, tpu.core_type = #tpu.core_type<tc>, window_params = [{transform_indices = @transform_0, window_bounds = array<i64: 16, 128>}, {transform_indices = @transform_1, window_bounds = array<i64: 16, 128>}, {transform_indices = @transform_2, window_bounds = array<i64: 8, 128>}]} {
    %c0_i32 = arith.constant 0 : i32
    %0 = arith.cmpi eq, %arg1, %c0_i32 : i32
    %1 = arith.extui %0 : i1 to i32
    %c0_i32_0 = arith.constant 0 : i32
    %2 = arith.cmpi ne, %1, %c0_i32_0 : i32
    scf.if %2 {
      %cst_12 = arith.constant 0.000000e+00 : f32
      %29 = vector.broadcast %cst_12 : f32 to vector<8x128xf32>
      %c0_13 = arith.constant 0 : index
      %c0_14 = arith.constant 0 : index
      %30 = vector.load %arg4[%c0_13, %c0_14] : memref<8x128xf32, #tpu.memory_space<vmem>>, vector<8x128xf32>
      tpu.vector_store %arg4[%c0_13, %c0_14], %29 {strides = array<i32>} : memref<8x128xf32, #tpu.memory_space<vmem>>, vector<8x128xf32>,
    } else {
    }
    %c1_i32 = arith.constant 1 : i32
    %3 = arith.muli %arg0, %c1_i32 : i32
    %4 = arith.addi %3, %arg1 : i32
    %c16_i32 = arith.constant 16 : i32
    %5 = arith.muli %4, %c16_i32 : i32
    %cst = arith.constant 0.000000e+00 : f32
    %6 = vector.broadcast %cst : f32 to vector<8x128xf32>
    %c0_i32_1 = arith.constant 0 : i32
    %c16_i32_2 = arith.constant 16 : i32
    %7 = arith.muli %c0_i32_1, %c16_i32_2 : i32
    %8 = tpu.assume_multiple %7, 16 : i32
    %9 = arith.index_cast %8 : i32 to index
    %c0 = arith.constant 0 : index
    %10 = vector.load %arg2[%9, %c0] : memref<16x128xf32, #tpu.memory_space<vmem>>, vector<16x128xf32>
    %11 = arith.index_cast %8 : i32 to index
    %c0_3 = arith.constant 0 : index
    %12 = vector.load %arg3[%11, %c0_3] : memref<16x128xf32, #tpu.memory_space<vmem>>, vector<16x128xf32>
    %13 = arith.subf %10, %12 : vector<16x128xf32>
    %14 = arith.mulf %13, %13 : vector<16x128xf32>
    %15 = arith.addi %5, %8 : i32
    %16 = tpu.iota {dimensions = array<i32: 0>} : vector<16x128xi32>
    %17 = vector.broadcast %15 : i32 to vector<16x128xi32>
    %18 = arith.addi %17, %16 : vector<16x128xi32>
    %c16_i32_4 = arith.constant 16 : i32
    %19 = vector.broadcast %c16_i32_4 : i32 to vector<16x128xi32>
    %20 = arith.cmpi slt, %18, %19 : vector<16x128xi32>
    %cst_5 = arith.constant 0.000000e+00 : f32
    %21 = vector.broadcast %cst_5 : f32 to vector<16x128xf32>
    %22 = arith.select %20, %14, %21 : vector<16x128xi1>, vector<16x128xf32>
    %23 = vector.shape_cast %22 : vector<16x128xf32> to vector<2x8x128xf32>
    %cst_6 = arith.constant dense<0.000000e+00> : vector<8x128xf32>
    %24 = vector.multi_reduction <add>, %23, %cst_6 [0] : vector<2x8x128xf32> to vector<8x128xf32>
    %25 = arith.addf %6, %24 : vector<8x128xf32>
    %c1_i32_7 = arith.constant 1 : i32
    %c0_8 = arith.constant 0 : index
    %c0_9 = arith.constant 0 : index
    %26 = vector.load %arg4[%c0_8, %c0_9] : memref<8x128xf32, #tpu.memory_space<vmem>>, vector<8x128xf32>
    %27 = arith.addf %26, %25 : vector<8x128xf32>
    %c0_10 = arith.constant 0 : index
    %c0_11 = arith.constant 0 : index
    %28 = vector.load %arg4[%c0_10, %c0_11] : memref<8x128xf32, #tpu.memory_space<vmem>>, vector<8x128xf32>
    tpu.vector_store %arg4[%c0_10, %c0_11], %27 {strides = array<i32>} : memref<8x128xf32, #tpu.memory_space<vmem>>, vector<8x128xf32>,
    return
  }
  func.func @transform_0(%arg0: i32, %arg1: i32) -> (i32, i32) {
    %c1_i32 = arith.constant 1 : i32
    %0 = arith.muli %arg0, %c1_i32 : i32
    %1 = arith.addi %0, %arg1 : i32
    %c0_i32 = arith.constant 0 : i32
    %2 = arith.minsi %1, %c0_i32 : i32
    %c0_i32_0 = arith.constant 0 : i32
    %c0_i32_1 = arith.constant 0 : i32
    return %2, %c0_i32_0 : i32, i32
  }
  func.func @transform_1(%arg0: i32, %arg1: i32) -> (i32, i32) {
    %c1_i32 = arith.constant 1 : i32
    %0 = arith.muli %arg0, %c1_i32 : i32
    %1 = arith.addi %0, %arg1 : i32
    %c0_i32 = arith.constant 0 : i32
    %2 = arith.minsi %1, %c0_i32 : i32
    %c0_i32_0 = arith.constant 0 : i32
    %c0_i32_1 = arith.constant 0 : i32
    return %2, %c0_i32_0 : i32, i32
  }
  func.func @transform_2(%arg0: i32, %arg1: i32) -> (i32, i32) {
    %c0_i32 = arith.constant 0 : i32
    %c0_i32_0 = arith.constant 0 : i32
    return %arg0, %c0_i32 : i32, i32
  }
}

</mosaic_0001>

<llo_original>
// kernel: content_loss_forward.1
$region0: #{content_loss_forward.1}
  #allocation0 [shape = 'u32[]', space=smem, size = 0x4, offset = 0x4, fixed_abs, tag = 'smem constant byte address 0x4 - core index']
  #allocation1 [shape = 'u32[72,128]{1,0:T(1,128)}', space=vmem, size = 0x9000, scoped, tag = 'internal scratch']
  %s0 = inlined_call_operand.vmem [shape: f32[16,128], index: 0, kind: input, shape index: {}]
  %s1 = inlined_call_operand.vmem [shape: f32[16,128], index: 1, kind: input, shape index: {}]
  %s2 = inlined_call_operand.vmem [shape: f32[8,128], index: 2, kind: output, shape index: {}]
  %s3 = sld [smem:[#allocation0]]
  $region22: #{content_loss_forward.1} parent=0
    _
  %s5 = ssub.s32 1, %s3
  %s6 = scalar_select 0, %s5, %s3
  // Predicated region
  $region2: #{content_loss_forward.1} parent=0 // pred_check
    _
  $region3: #{content_loss_forward.1} parent=0 // pred_check_branch
    %8 = sbr.rel (0) target = $region5
  $region4: #{content_loss_forward.1} parent=0 // pred_region
    %s9 = sadd.s32 0, 0
    %p10 = scmp.lt.s32.totalorder %s9, 0
    %s11 = scalar_select %p10, %s9, 0
    %s12 = smul.u32 2, %s11
    %p13 = scmp.lt.s32.totalorder %s12, 1
    %s14 = scalar_select %p13, %s12, 1
    %s15 = smul.addr %s14, 8
    %s16 = scalar_lea.vmem %s0, %s15
    %s17 = sadd.s32 0, 0
    %p18 = scmp.lt.s32.totalorder %s17, 0
    %s19 = scalar_select %p18, %s17, 0
    %s20 = smul.u32 2, %s19
  $region5: #{content_loss_forward.1} parent=0 // pred_fallthru
    _
  // Predicated region
  $region6: #{content_loss_forward.1} parent=0 // pred_check
    _
  $region7: #{content_loss_forward.1} parent=0 // pred_check_branch
    %22 = sbr.rel (0) target = $region9
  $region8: #{content_loss_forward.1} parent=0 // pred_region
    %s23 = sadd.s32 0, 0
    %p24 = scmp.lt.s32.totalorder %s23, 0
    %s25 = scalar_select %p24, %s23, 0
    %s26 = smul.u32 2, %s25
    %p27 = scmp.lt.s32.totalorder %s26, 1
    %s28 = scalar_select %p27, %s26, 1
    %s29 = smul.addr %s28, 8
    %s30 = scalar_lea.vmem %s1, %s29
    %s31 = sadd.s32 0, 0
    %p32 = scmp.lt.s32.totalorder %s31, 0
    %s33 = scalar_select %p32, %s31, 0
    %s34 = smul.u32 2, %s33
  $region9: #{content_loss_forward.1} parent=0 // pred_fallthru
    _
  %s35 = sadd.s32 0, 0
  %p36 = scmp.lt.s32.totalorder %s35, 0
  %s37 = scalar_select %p36, %s35, 0
  %s38 = smul.u32 2, %s37
  %p39 = scmp.lt.s32.totalorder %s38, 1
  %s40 = scalar_select %p39, %s38, 1
  %s41 = smul.addr %s40, 8
  %s42 = scalar_lea.vmem %s0, %s41
  %s43 = sadd.s32 0, 0
  %p44 = scmp.lt.s32.totalorder %s43, 0
  %s45 = scalar_select %p44, %s43, 0
  %s46 = smul.u32 2, %s45
  %p47 = scmp.lt.s32.totalorder %s46, 1
  %s48 = scalar_select %p47, %s46, 1
  %s49 = smul.addr %s48, 8
  %s50 = scalar_lea.vmem %s1, %s49
  %s51 = sadd.s32 0, 0
  %p52 = scmp.lt.s32.totalorder %s51, 0
  %s53 = scalar_select %p52, %s51, 0
  %s54 = smul.u32 2, %s53
  %p55 = scmp.lt.s32.totalorder %s54, 1
  %s56 = scalar_select %p55, %s54, 1
  %s57 = smul.addr %s56, 8
  %s58 = scalar_lea.vmem %s0, %s57
  %s59 = sadd.s32 0, 0
  %p60 = scmp.lt.s32.totalorder %s59, 0
  %s61 = scalar_select %p60, %s59, 0
  %s62 = smul.u32 2, %s61
  %s63 = sadd.s32 0, 0
  %p64 = scmp.lt.s32.totalorder %s63, 0
  %s65 = scalar_select %p64, %s63, 0
  %s66 = smul.u32 2, %s65
  %p67 = scmp.lt.s32.totalorder %s66, 1
  %s68 = scalar_select %p67, %s66, 1
  %s69 = smul.addr %s68, 8
  %s70 = scalar_lea.vmem %s1, %s69
  %s71 = sadd.s32 0, 0
  %p72 = scmp.lt.s32.totalorder %s71, 0
  %s73 = scalar_select %p72, %s71, 0
  %s74 = smul.u32 2, %s73
  %p75 = scmp.eq.s32.totalorder 0, 0
  // Predicated region
  $region10: #{content_loss_forward.1} parent=0 // pred_check
    %p76 = pneg %p75
  $region11: #{content_loss_forward.1} parent=0 // pred_check_branch
    %78 = sbr.rel (%p76) target = $region13
  $region12: #{content_loss_forward.1} parent=0 // pred_region
    %79 = vst [vmem:[%s2] sm:$0xff] 0.0
  $region13: #{content_loss_forward.1} parent=0 // pred_fallthru
    _
  %s80 = sadd.s32 0, 0
  %s81 = smul.u32 %s80, 16
  %v82 = vld [vmem:[%s58] sm:$0xff]
  %v83 = vld [vmem:[%s58 + $0x8] sm:$0xff]
  %v84 = vld [vmem:[%s70] sm:$0xff]
  %v85 = vld [vmem:[%s70 + $0x8] sm:$0xff]
  %v86 = vsub.f32 %v82, %v84
  %v87 = vsub.f32 %v83, %v85
  %v88 = vmul.f32 %v86, %v86
  %v89 = vmul.f32 %v87, %v87
  %s90 = sadd.s32 %s81, 0
  %v91 = vlaneseq
  %v92 = vshrl.u32 %v91, 7
  %v93 = vadd.s32 %v92, 8
  %v94 = vstv %s90
  %v95 = vadd.s32 %v94, %v92
  %v96 = vadd.s32 %v94, %v93
  %vm97 = vcmp.lt.s32.totalorder %v95, 16
  %vm98 = vcmp.lt.s32.totalorder %v96, 16
  %v99 = vsel %vm97, %v88, 0.0
  %v100 = vsel %vm98, %v89, 0.0
  %v101 = vadd.f32 %v99, %v100
  %v102 = vadd.f32 %v101, 0.0
  %v103 = vld [vmem:[%s2] sm:$0xff]
  %v104 = vadd.f32 %v103, %v102
  %105 = vst [vmem:[%s2] sm:$0xff] %v104
  // Predicated region
  $region14: #{content_loss_forward.1} parent=0 // pred_check
    _
  $region15: #{content_loss_forward.1} parent=0 // pred_check_branch
    %107 = sbr.rel (0) target = $region17
  $region16: #{content_loss_forward.1} parent=0 // pred_region
    _
  $region17: #{content_loss_forward.1} parent=0 // pred_fallthru
    _
  // Predicated region
  $region18: #{content_loss_forward.1} parent=0 // pred_check
    _
  $region19: #{content_loss_forward.1} parent=0 // pred_check_branch
    %109 = sbr.rel (0) target = $region21
  $region20: #{content_loss_forward.1} parent=0 // pred_region
    _
  $region21: #{content_loss_forward.1} parent=0 // pred_fallthru
    _

</llo_original>
